<compile_context>
chip_gen: v7x
topology: tpu7x:2x2x1
jax: 0.10.0
libtpu: 0.0.40
codegen_flags: <defaults>
</compile_context>

<pallas_src>
import math

import jax
import jax.numpy as jnp
from jax import lax
from jax.experimental import pallas as pl
from jax.experimental.pallas import tpu as pltpu

D_MODEL = 64
NUM_HEADS = 4
D_K = D_MODEL // NUM_HEADS
D_FF = 4 * D_MODEL
IN_FEATURES = 784
NUM_CLASSES = 2
CLS_PAD = 8            # transposed head: 2 real class rows + 6 zero rows (sublane-aligned)
LN_EPS = 1e-5
TB_MAX = 1024          # batch tile (rows); ~10 MiB scoped VMEM incl. double buffers


def digit_transformer_kernel(
    x_ref, w_in_ref, b_in_ref,
    g1_ref, bn1_ref,
    w1_ref, b1_ref, w2_ref, b2_ref,
    wout_t_ref, bout_t_ref,
    out_ref,
):
    f32 = jnp.float32
    bf16 = jnp.bfloat16

    # f32 input streamed straight from HBM; cast to bf16 in-kernel (VPU slack).
    x = x_ref[...].astype(bf16)                                       # (TB, 784)

    # Fused input projection + positional encoding + attention + residual:
    #   y = x @ (W_in (I + Wv Wo)) + ((b_in + pe)(I + Wv Wo) + bv Wo + bo)
    # (seq_len == 1 => softmax over the single key position == 1, so the whole
    #  attention block is a linear map, pre-folded in the wrapper.)
    y = jnp.dot(x, w_in_ref[...], preferred_element_type=f32) + b_in_ref[...]   # (TB, 64) f32

    # LayerNorm 1 (biased variance, torch default eps)
    mu = jnp.mean(y, axis=-1, keepdims=True)
    var = jnp.mean(jnp.square(y - mu), axis=-1, keepdims=True)
    y = (y - mu) * lax.rsqrt(var + LN_EPS) * g1_ref[...] + bn1_ref[...]

    # Feed-forward: Linear(64, 256) -> ReLU -> Linear(256, 64)
    f = jnp.dot(y.astype(bf16), w1_ref[...], preferred_element_type=f32) + b1_ref[...]
    f = jnp.maximum(f, 0.0)
    f = jnp.dot(f.astype(bf16), w2_ref[...], preferred_element_type=f32) + b2_ref[...]

    # Residual + LayerNorm 2 (normalize only; affine folded into the head weights)
    z = y + f
    mu2 = jnp.mean(z, axis=-1, keepdims=True)
    var2 = jnp.mean(jnp.square(z - mu2), axis=-1, keepdims=True)
    z = (z - mu2) * lax.rsqrt(var2 + LN_EPS)

    # Transposed classification head: (8, 64) contracted with (TB, 64) -> (8, TB),
    # so HBM writeback is 32 B/example instead of a 128-lane padded f32 row.
    out_ref[...] = lax.dot_general(
        wout_t_ref[...], z.astype(bf16),
        dimension_numbers=(((1,), (1,)), ((), ())),
        preferred_element_type=f32,
    ) + bout_t_ref[...]


def make_params(key):
    """Deterministic parameter init mimicking nn.Linear defaults (uniform ±1/sqrt(fan_in))."""
    def lin(k, fan_in, fan_out):
        k1, k2 = jax.random.split(k)
        bound = 1.0 / math.sqrt(fan_in)
        w = jax.random.uniform(k1, (fan_in, fan_out), jnp.float32, -bound, bound)
        b = jax.random.uniform(k2, (1, fan_out), jnp.float32, -bound, bound)
        return w, b

    keys = jax.random.split(key, 8)
    p = {}
    p["w_in"], p["b_in"] = lin(keys[0], IN_FEATURES, D_MODEL)
    p["wq"], p["bq"] = lin(keys[1], D_MODEL, D_MODEL)
    p["wk"], p["bk"] = lin(keys[2], D_MODEL, D_MODEL)
    p["wv"], p["bv"] = lin(keys[3], D_MODEL, D_MODEL)
    p["wo"], p["bo"] = lin(keys[4], D_MODEL, D_MODEL)
    p["g1"], p["bn1"] = jnp.ones((1, D_MODEL), jnp.float32), jnp.zeros((1, D_MODEL), jnp.float32)
    p["w1"], p["b1"] = lin(keys[5], D_MODEL, D_FF)
    p["w2"], p["b2"] = lin(keys[6], D_FF, D_MODEL)
    p["g2"], p["bn2"] = jnp.ones((1, D_MODEL), jnp.float32), jnp.zeros((1, D_MODEL), jnp.float32)
    p["wout"], p["bout"] = lin(keys[7], D_MODEL, NUM_CLASSES)

    # Positional encoding, row 0 only (seq_len == 1): sin(0)=0 even dims, cos(0)=1 odd dims.
    half = jnp.arange(0, D_MODEL, 2, dtype=jnp.float32)
    div = jnp.exp(half * (-math.log(10000.0) / D_MODEL))
    pe = jnp.zeros((D_MODEL,), jnp.float32)
    pe = pe.at[0::2].set(jnp.sin(0.0 * div))
    pe = pe.at[1::2].set(jnp.cos(0.0 * div))
    p["pe"] = pe.reshape(1, D_MODEL)
    return p


def _pick_tile(B):
    """Lane-/sublane-legal batch tile: full batch for small B, >=2 tiles when feasible."""
    if B > TB_MAX:
        return TB_MAX                               # multiple of 128; partial tail tile is fine
    if B >= 256:
        return ((B + 255) // 256) * 128             # ~B/2 rounded up to 128 -> >=2 grid steps (v7x megacore)
    return B                                        # block == full array dim (legal for any B)


@jax.jit
def digit_transformer(x, p):
    f32, bf16 = jnp.float32, jnp.bfloat16
    B = x.shape[0]
    x2d = x.reshape(B, -1).astype(f32)
    # The reference model only makes sense for seq_len == 1 (the 64->2 head is applied
    # to the flattened (B, seq*64) tensor); the attention fold below relies on it.
    assert x2d.shape[1] == IN_FEATURES, "DigitTransformer requires exactly 784 input features (seq_len == 1)"

    TB = _pick_tile(B)
    grid = (pl.cdiv(B, TB),)

    # --- algebraic folds (f32), then bf16 casts for MXU operands only ---
    w_vo = p["wv"] @ p["wo"]                                   # (64, 64)
    b_vo = p["bv"] @ p["wo"] + p["bo"]                         # (1, 64)
    m = jnp.eye(D_MODEL, dtype=f32) + w_vo                     # I + Wv Wo  (residual + attention)
    w_in = (p["w_in"] @ m).astype(bf16)                        # (784, 64)
    b_in = (p["b_in"] + p["pe"]) @ m + b_vo                    # (1, 64) f32

    wout_s = p["g2"].T * p["wout"]                             # LN2 scale folded into head (64, 2)
    bout_s = p["bn2"] @ p["wout"] + p["bout"]                  # LN2 shift folded into head (1, 2)
    wout_t = jnp.pad(wout_s.T, ((0, CLS_PAD - NUM_CLASSES), (0, 0))).astype(bf16)   # (8, 64)
    bout_t = jnp.pad(bout_s.T, ((0, CLS_PAD - NUM_CLASSES), (0, 0)))                # (8, 1) f32

    args = (
        x2d, w_in, b_in,
        p["g1"], p["bn1"],
        p["w1"].astype(bf16), p["b1"], p["w2"].astype(bf16), p["b2"],
        wout_t, bout_t,
    )

    def resident(a):   # weights/biases: same block every grid step -> stays VMEM-resident
        return pl.BlockSpec(a.shape, lambda i: (0, 0))

    in_specs = [pl.BlockSpec((TB, IN_FEATURES), lambda i: (i, 0))] + [resident(a) for a in args[1:]]

    out = pl.pallas_call(
        digit_transformer_kernel,
        out_shape=jax.ShapeDtypeStruct((CLS_PAD, B), f32),
        grid=grid,
        in_specs=in_specs,
        out_specs=pl.BlockSpec((CLS_PAD, TB), lambda i: (0, i)),
        compiler_params=pltpu.CompilerParams(
            dimension_semantics=("parallel",),
            vmem_limit_bytes=48 * 1024 * 1024,      # safe on v5e/v6e and within v7x's 64 MiB/TC
        ),
    )(*args)
    return out[:NUM_CLASSES].T                       # (B, 2)


def reference_forward(x, p):
    """Pure-JAX mirror of the PyTorch module (full multi-head attention path, f32)."""
    B = x.shape[0]
    x = x.reshape(B, -1, IN_FEATURES).astype(jnp.float32)          # (B, 1, 784)
    h = x @ p["w_in"] + p["b_in"] + p["pe"]                        # (B, 1, 64)

    def mha(h):
        q = (h @ p["wq"] + p["bq"]).reshape(B, -1, NUM_HEADS, D_K).transpose(0, 2, 1, 3)
        k = (h @ p["wk"] + p["bk"]).reshape(B, -1, NUM_HEADS, D_K).transpose(0, 2, 1, 3)
        v = (h @ p["wv"] + p["bv"]).reshape(B, -1, NUM_HEADS, D_K).transpose(0, 2, 1, 3)
        s = jnp.einsum("bhqd,bhkd->bhqk", q, k) / math.sqrt(D_K)
        w = jax.nn.softmax(s, axis=-1)
        o = jnp.einsum("bhqk,bhkd->bhqd", w, v)
        o = o.transpose(0, 2, 1, 3).reshape(B, -1, D_MODEL)
        return o @ p["wo"] + p["bo"]

    def ln(y, g, b):
        mu = jnp.mean(y, -1, keepdims=True)
        var = jnp.mean(jnp.square(y - mu), -1, keepdims=True)
        return (y - mu) / jnp.sqrt(var + LN_EPS) * g + b

    y = ln(h + mha(h), p["g1"], p["bn1"])
    f = jnp.maximum(y @ p["w1"] + p["b1"], 0.0) @ p["w2"] + p["b2"]
    z = ln(y + f, p["g2"], p["bn2"])
    return z.reshape(B, -1) @ p["wout"] + p["bout"]


if __name__ == "__main__":
    key = jax.random.PRNGKey(0)
    kx, kp = jax.random.split(key)
    # MNIST-style input: (batch, 1, 28, 28) -> view(B, -1, 784) -> seq_len 1.
    x = jax.random.normal(kx, (4, 1, 28, 28), jnp.float32)
    params = make_params(kp)

    out = jax.block_until_ready(digit_transformer(x, params))
    ref = reference_forward(x, params)

    assert out.shape == (4, NUM_CLASSES), out.shape
    assert bool(jnp.all(jnp.isfinite(out)))
    # bf16 MXU matmuls with f32 accumulation: loosened tolerance vs the f32 reference.
    assert jnp.allclose(out, ref, rtol=5e-2, atol=5e-2), (out, ref)
    print("KERNEL_OK")
</pallas_src>

<mosaic_0001>
module attributes {stable_mosaic.version = 11 : i64} {
  func.func @digit_transformer_kernel(%arg0: i32, %arg1: memref<4x784xf32, #tpu.memory_space<vmem>>, %arg2: memref<784x64xbf16, #tpu.memory_space<vmem>>, %arg3: memref<1x64xf32, #tpu.memory_space<vmem>>, %arg4: memref<1x64xf32, #tpu.memory_space<vmem>>, %arg5: memref<1x64xf32, #tpu.memory_space<vmem>>, %arg6: memref<64x256xbf16, #tpu.memory_space<vmem>>, %arg7: memref<1x256xf32, #tpu.memory_space<vmem>>, %arg8: memref<256x64xbf16, #tpu.memory_space<vmem>>, %arg9: memref<1x64xf32, #tpu.memory_space<vmem>>, %arg10: memref<8x64xbf16, #tpu.memory_space<vmem>>, %arg11: memref<8x1xf32, #tpu.memory_space<vmem>>, %arg12: memref<8x4xf32, #tpu.memory_space<vmem>>) attributes {dimension_semantics = [#tpu.dimension_semantics<parallel>], iteration_bounds = array<i64: 1>, scalar_prefetch = 0 : i64, scratch_operands = 0 : i64, tpu.core_type = #tpu.core_type<tc>, window_params = [{transform_indices = @transform_0, window_bounds = array<i64: 4, 784>}, {pipeline_mode = #tpu.pipeline_mode<synchronous>, transform_indices = @transform_1, window_bounds = array<i64: 784, 64>}, {pipeline_mode = #tpu.pipeline_mode<synchronous>, transform_indices = @transform_2, window_bounds = array<i64: 1, 64>}, {pipeline_mode = #tpu.pipeline_mode<synchronous>, transform_indices = @transform_3, window_bounds = array<i64: 1, 64>}, {pipeline_mode = #tpu.pipeline_mode<synchronous>, transform_indices = @transform_4, window_bounds = array<i64: 1, 64>}, {pipeline_mode = #tpu.pipeline_mode<synchronous>, transform_indices = @transform_5, window_bounds = array<i64: 64, 256>}, {pipeline_mode = #tpu.pipeline_mode<synchronous>, transform_indices = @transform_6, window_bounds = array<i64: 1, 256>}, {pipeline_mode = #tpu.pipeline_mode<synchronous>, transform_indices = @transform_7, window_bounds = array<i64: 256, 64>}, {pipeline_mode = #tpu.pipeline_mode<synchronous>, transform_indices = @transform_8, window_bounds = array<i64: 1, 64>}, {pipeline_mode = #tpu.pipeline_mode<synchronous>, transform_indices = @transform_9, window_bounds = array<i64: 8, 64>}, {pipeline_mode = #tpu.pipeline_mode<synchronous>, transform_indices = @transform_10, window_bounds = array<i64: 8, 1>}, {transform_indices = @transform_11, window_bounds = array<i64: 8, 4>}]} {
    %c0 = arith.constant 0 : index
    %c0_0 = arith.constant 0 : index
    %0 = vector.load %arg1[%c0, %c0_0] : memref<4x784xf32, #tpu.memory_space<vmem>>, vector<4x784xf32>
    %1 = arith.truncf %0 : vector<4x784xf32> to vector<4x784xbf16>
    %c0_1 = arith.constant 0 : index
    %c0_2 = arith.constant 0 : index
    %2 = vector.load %arg2[%c0_1, %c0_2] : memref<784x64xbf16, #tpu.memory_space<vmem>>, vector<784x64xbf16>
    %cst = arith.constant dense<0.000000e+00> : vector<4x64xf32>
    %3 = tpu.matmul %1, %2, %cst {dimension_numbers = #tpu.dot_dimension_numbers<[1], [0], [0], [1], [0, 0, 1, 1], [], []>} : vector<4x784xbf16>, vector<784x64xbf16>, vector<4x64xf32> -> vector<4x64xf32>
    %c0_3 = arith.constant 0 : index
    %c0_4 = arith.constant 0 : index
    %4 = vector.load %arg3[%c0_3, %c0_4] : memref<1x64xf32, #tpu.memory_space<vmem>>, vector<1x64xf32>
    %5 = vector.broadcast %4 : vector<1x64xf32> to vector<4x64xf32>
    %6 = arith.addf %3, %5 : vector<4x64xf32>
    %cst_5 = arith.constant dense<0.000000e+00> : vector<4xf32>
    %7 = vector.multi_reduction <add>, %6, %cst_5 [1] : vector<4x64xf32> to vector<4xf32>
    %8 = vector.shape_cast %7 : vector<4xf32> to vector<4x1xf32>
    %cst_6 = arith.constant 6.400000e+01 : f32
    %9 = vector.broadcast %cst_6 : f32 to vector<4x1xf32>
    %10 = arith.divf %8, %9 : vector<4x1xf32>
    %11 = vector.broadcast %10 : vector<4x1xf32> to vector<4x64xf32>
    %12 = arith.subf %6, %11 : vector<4x64xf32>
    %13 = arith.mulf %12, %12 : vector<4x64xf32>
    %cst_7 = arith.constant dense<0.000000e+00> : vector<4xf32>
    %14 = vector.multi_reduction <add>, %13, %cst_7 [1] : vector<4x64xf32> to vector<4xf32>
    %15 = vector.shape_cast %14 : vector<4xf32> to vector<4x1xf32>
    %cst_8 = arith.constant 6.400000e+01 : f32
    %16 = vector.broadcast %cst_8 : f32 to vector<4x1xf32>
    %17 = arith.divf %15, %16 : vector<4x1xf32>
    %18 = vector.broadcast %10 : vector<4x1xf32> to vector<4x64xf32>
    %19 = arith.subf %6, %18 : vector<4x64xf32>
    %cst_9 = arith.constant 9.99999974E-6 : f32
    %20 = vector.broadcast %cst_9 : f32 to vector<4x1xf32>
    %21 = arith.addf %17, %20 : vector<4x1xf32>
    %22 = math.rsqrt %21 : vector<4x1xf32>
    %23 = vector.broadcast %22 : vector<4x1xf32> to vector<4x64xf32>
    %24 = arith.mulf %19, %23 : vector<4x64xf32>
    %c0_10 = arith.constant 0 : index
    %c0_11 = arith.constant 0 : index
    %25 = vector.load %arg4[%c0_10, %c0_11] : memref<1x64xf32, #tpu.memory_space<vmem>>, vector<1x64xf32>
    %26 = vector.broadcast %25 : vector<1x64xf32> to vector<4x64xf32>
    %27 = arith.mulf %24, %26 : vector<4x64xf32>
    %c0_12 = arith.constant 0 : index
    %c0_13 = arith.constant 0 : index
    %28 = vector.load %arg5[%c0_12, %c0_13] : memref<1x64xf32, #tpu.memory_space<vmem>>, vector<1x64xf32>
    %29 = vector.broadcast %28 : vector<1x64xf32> to vector<4x64xf32>
    %30 = arith.addf %27, %29 : vector<4x64xf32>
    %31 = arith.truncf %30 : vector<4x64xf32> to vector<4x64xbf16>
    %c0_14 = arith.constant 0 : index
    %c0_15 = arith.constant 0 : index
    %32 = vector.load %arg6[%c0_14, %c0_15] : memref<64x256xbf16, #tpu.memory_space<vmem>>, vector<64x256xbf16>
    %cst_16 = arith.constant dense<0.000000e+00> : vector<4x256xf32>
    %33 = tpu.matmul %31, %32, %cst_16 {dimension_numbers = #tpu.dot_dimension_numbers<[1], [0], [0], [1], [0, 0, 1, 1], [], []>} : vector<4x64xbf16>, vector<64x256xbf16>, vector<4x256xf32> -> vector<4x256xf32>
    %c0_17 = arith.constant 0 : index
    %c0_18 = arith.constant 0 : index
    %34 = vector.load %arg7[%c0_17, %c0_18] : memref<1x256xf32, #tpu.memory_space<vmem>>, vector<1x256xf32>
    %35 = vector.broadcast %34 : vector<1x256xf32> to vector<4x256xf32>
    %36 = arith.addf %33, %35 : vector<4x256xf32>
    %cst_19 = arith.constant 0.000000e+00 : f32
    %37 = vector.broadcast %cst_19 : f32 to vector<4x256xf32>
    %38 = arith.maximumf %36, %37 : vector<4x256xf32>
    %39 = arith.truncf %38 : vector<4x256xf32> to vector<4x256xbf16>
    %c0_20 = arith.constant 0 : index
    %c0_21 = arith.constant 0 : index
    %40 = vector.load %arg8[%c0_20, %c0_21] : memref<256x64xbf16, #tpu.memory_space<vmem>>, vector<256x64xbf16>
    %cst_22 = arith.constant dense<0.000000e+00> : vector<4x64xf32>
    %41 = tpu.matmul %39, %40, %cst_22 {dimension_numbers = #tpu.dot_dimension_numbers<[1], [0], [0], [1], [0, 0, 1, 1], [], []>} : vector<4x256xbf16>, vector<256x64xbf16>, vector<4x64xf32> -> vector<4x64xf32>
    %c0_23 = arith.constant 0 : index
    %c0_24 = arith.constant 0 : index
    %42 = vector.load %arg9[%c0_23, %c0_24] : memref<1x64xf32, #tpu.memory_space<vmem>>, vector<1x64xf32>
    %43 = vector.broadcast %42 : vector<1x64xf32> to vector<4x64xf32>
    %44 = arith.addf %41, %43 : vector<4x64xf32>
    %45 = arith.addf %30, %44 : vector<4x64xf32>
    %cst_25 = arith.constant dense<0.000000e+00> : vector<4xf32>
    %46 = vector.multi_reduction <add>, %45, %cst_25 [1] : vector<4x64xf32> to vector<4xf32>
    %47 = vector.shape_cast %46 : vector<4xf32> to vector<4x1xf32>
    %cst_26 = arith.constant 6.400000e+01 : f32
    %48 = vector.broadcast %cst_26 : f32 to vector<4x1xf32>
    %49 = arith.divf %47, %48 : vector<4x1xf32>
    %50 = vector.broadcast %49 : vector<4x1xf32> to vector<4x64xf32>
    %51 = arith.subf %45, %50 : vector<4x64xf32>
    %52 = arith.mulf %51, %51 : vector<4x64xf32>
    %cst_27 = arith.constant dense<0.000000e+00> : vector<4xf32>
    %53 = vector.multi_reduction <add>, %52, %cst_27 [1] : vector<4x64xf32> to vector<4xf32>
    %54 = vector.shape_cast %53 : vector<4xf32> to vector<4x1xf32>
    %cst_28 = arith.constant 6.400000e+01 : f32
    %55 = vector.broadcast %cst_28 : f32 to vector<4x1xf32>
    %56 = arith.divf %54, %55 : vector<4x1xf32>
    %57 = vector.broadcast %49 : vector<4x1xf32> to vector<4x64xf32>
    %58 = arith.subf %45, %57 : vector<4x64xf32>
    %cst_29 = arith.constant 9.99999974E-6 : f32
    %59 = vector.broadcast %cst_29 : f32 to vector<4x1xf32>
    %60 = arith.addf %56, %59 : vector<4x1xf32>
    %61 = math.rsqrt %60 : vector<4x1xf32>
    %62 = vector.broadcast %61 : vector<4x1xf32> to vector<4x64xf32>
    %63 = arith.mulf %58, %62 : vector<4x64xf32>
    %c0_30 = arith.constant 0 : index
    %c0_31 = arith.constant 0 : index
    %64 = vector.load %arg10[%c0_30, %c0_31] : memref<8x64xbf16, #tpu.memory_space<vmem>>, vector<8x64xbf16>
    %65 = arith.truncf %63 : vector<4x64xf32> to vector<4x64xbf16>
    %cst_32 = arith.constant dense<0.000000e+00> : vector<8x4xf32>
    %66 = tpu.matmul %64, %65, %cst_32 {dimension_numbers = #tpu.dot_dimension_numbers<[1], [1], [0], [0], [0, 0, 1, 0], [], []>} : vector<8x64xbf16>, vector<4x64xbf16>, vector<8x4xf32> -> vector<8x4xf32>
    %c0_33 = arith.constant 0 : index
    %c0_34 = arith.constant 0 : index
    %67 = vector.load %arg11[%c0_33, %c0_34] : memref<8x1xf32, #tpu.memory_space<vmem>>, vector<8x1xf32>
    %68 = vector.broadcast %67 : vector<8x1xf32> to vector<8x4xf32>
    %69 = arith.addf %66, %68 : vector<8x4xf32>
    %c0_35 = arith.constant 0 : index
    %c0_36 = arith.constant 0 : index
    %70 = vector.load %arg12[%c0_35, %c0_36] : memref<8x4xf32, #tpu.memory_space<vmem>>, vector<8x4xf32>
    tpu.vector_store %arg12[%c0_35, %c0_36], %69 {strides = array<i32>} : memref<8x4xf32, #tpu.memory_space<vmem>>, vector<8x4xf32>,
    return
  }
  func.func @transform_0(%arg0: i32) -> (i32, i32) {
    %c0_i32 = arith.constant 0 : i32
    %c0_i32_0 = arith.constant 0 : i32
    return %arg0, %c0_i32 : i32, i32
  }
  func.func @transform_1(%arg0: i32) -> (i32, i32) {
    %c0_i32 = arith.constant 0 : i32
    %c0_i32_0 = arith.constant 0 : i32
    %c0_i32_1 = arith.constant 0 : i32
    return %c0_i32, %c0_i32_0 : i32, i32
  }
  func.func @transform_2(%arg0: i32) -> (i32, i32) {
    %c0_i32 = arith.constant 0 : i32
    %c0_i32_0 = arith.constant 0 : i32
    %c0_i32_1 = arith.constant 0 : i32
    return %c0_i32, %c0_i32_0 : i32, i32
  }
  func.func @transform_3(%arg0: i32) -> (i32, i32) {
    %c0_i32 = arith.constant 0 : i32
    %c0_i32_0 = arith.constant 0 : i32
    %c0_i32_1 = arith.constant 0 : i32
    return %c0_i32, %c0_i32_0 : i32, i32
  }
  func.func @transform_4(%arg0: i32) -> (i32, i32) {
    %c0_i32 = arith.constant 0 : i32
    %c0_i32_0 = arith.constant 0 : i32
    %c0_i32_1 = arith.constant 0 : i32
    return %c0_i32, %c0_i32_0 : i32, i32
  }
  func.func @transform_5(%arg0: i32) -> (i32, i32) {
    %c0_i32 = arith.constant 0 : i32
    %c0_i32_0 = arith.constant 0 : i32
    %c0_i32_1 = arith.constant 0 : i32
    return %c0_i32, %c0_i32_0 : i32, i32
  }
  func.func @transform_6(%arg0: i32) -> (i32, i32) {
    %c0_i32 = arith.constant 0 : i32
    %c0_i32_0 = arith.constant 0 : i32
    %c0_i32_1 = arith.constant 0 : i32
    return %c0_i32, %c0_i32_0 : i32, i32
  }
  func.func @transform_7(%arg0: i32) -> (i32, i32) {
    %c0_i32 = arith.constant 0 : i32
    %c0_i32_0 = arith.constant 0 : i32
    %c0_i32_1 = arith.constant 0 : i32
    return %c0_i32, %c0_i32_0 : i32, i32
  }
  func.func @transform_8(%arg0: i32) -> (i32, i32) {
    %c0_i32 = arith.constant 0 : i32
    %c0_i32_0 = arith.constant 0 : i32
    %c0_i32_1 = arith.constant 0 : i32
    return %c0_i32, %c0_i32_0 : i32, i32
  }
  func.func @transform_9(%arg0: i32) -> (i32, i32) {
    %c0_i32 = arith.constant 0 : i32
    %c0_i32_0 = arith.constant 0 : i32
    %c0_i32_1 = arith.constant 0 : i32
    return %c0_i32, %c0_i32_0 : i32, i32
  }
  func.func @transform_10(%arg0: i32) -> (i32, i32) {
    %c0_i32 = arith.constant 0 : i32
    %c0_i32_0 = arith.constant 0 : i32
    %c0_i32_1 = arith.constant 0 : i32
    return %c0_i32, %c0_i32_0 : i32, i32
  }
  func.func @transform_11(%arg0: i32) -> (i32, i32) {
    %c0_i32 = arith.constant 0 : i32
    %c0_i32_0 = arith.constant 0 : i32
    return %c0_i32, %arg0 : i32, i32
  }
}

</mosaic_0001>

<llo_original>
// kernel: digit_transformer.1
$region0: #{digit_transformer.1}
  #allocation0 [shape = 'u32[]', space=smem, size = 0x4, offset = 0x4, fixed_abs, tag = 'smem constant byte address 0x4 - core index']
  #allocation1 [shape = 'u32[144,128]{1,0:T(1,128)}', space=vmem, size = 0x12000, scoped, tag = 'internal scratch']
  %s0 = inlined_call_operand.vmem [shape: f32[4,784], index: 0, kind: input, shape index: {}]
  %s1 = inlined_call_operand.vmem [shape: bf16[784,64], index: 1, kind: input, shape index: {}]
  %s2 = inlined_call_operand.vmem [shape: f32[1,64], index: 2, kind: input, shape index: {}]
  %s3 = inlined_call_operand.vmem [shape: f32[1,64], index: 3, kind: input, shape index: {}]
  %s4 = inlined_call_operand.vmem [shape: f32[1,64], index: 4, kind: input, shape index: {}]
  %s5 = inlined_call_operand.vmem [shape: bf16[64,256], index: 5, kind: input, shape index: {}]
  %s6 = inlined_call_operand.vmem [shape: f32[1,256], index: 6, kind: input, shape index: {}]
  %s7 = inlined_call_operand.vmem [shape: bf16[256,64], index: 7, kind: input, shape index: {}]
  %s8 = inlined_call_operand.vmem [shape: f32[1,64], index: 8, kind: input, shape index: {}]
  %s9 = inlined_call_operand.vmem [shape: bf16[8,64], index: 9, kind: input, shape index: {}]
  %s10 = inlined_call_operand.vmem [shape: f32[8,1], index: 10, kind: input, shape index: {}]
  %s11 = inlined_call_operand.vmem [shape: f32[8,4], index: 11, kind: output, shape index: {}]
  %s12 = sld [smem:[#allocation0]]
  $region54: #{digit_transformer.1} parent=0
    _
  %s14 = ssub.s32 1, %s12
  %s15 = scalar_select 0, %s14, %s12
  // Predicated region
  $region2: #{digit_transformer.1} parent=0 // pred_check
    _
  $region3: #{digit_transformer.1} parent=0 // pred_check_branch
    %17 = sbr.rel (0) target = $region5
  $region4: #{digit_transformer.1} parent=0 // pred_region
    _
  $region5: #{digit_transformer.1} parent=0 // pred_fallthru
    _
  // Predicated region
  $region6: #{digit_transformer.1} parent=0 // pred_check
    _
  $region7: #{digit_transformer.1} parent=0 // pred_check_branch
    %19 = sbr.rel (0) target = $region9
  $region8: #{digit_transformer.1} parent=0 // pred_region
    _
  $region9: #{digit_transformer.1} parent=0 // pred_fallthru
    _
  // Predicated region
  $region10: #{digit_transformer.1} parent=0 // pred_check
    _
  $region11: #{digit_transformer.1} parent=0 // pred_check_branch
    %21 = sbr.rel (0) target = $region13
  $region12: #{digit_transformer.1} parent=0 // pred_region
    _
  $region13: #{digit_transformer.1} parent=0 // pred_fallthru
    _
  // Predicated region
  $region14: #{digit_transformer.1} parent=0 // pred_check
    _
  $region15: #{digit_transformer.1} parent=0 // pred_check_branch
    %23 = sbr.rel (0) target = $region17
  $region16: #{digit_transformer.1} parent=0 // pred_region
    _
  $region17: #{digit_transformer.1} parent=0 // pred_fallthru
    _
  // Predicated region
  $region18: #{digit_transformer.1} parent=0 // pred_check
    _
  $region19: #{digit_transformer.1} parent=0 // pred_check_branch
    %25 = sbr.rel (0) target = $region21
  $region20: #{digit_transformer.1} parent=0 // pred_region
    _
  $region21: #{digit_transformer.1} parent=0 // pred_fallthru
    _
  // Predicated region
  $region22: #{digit_transformer.1} parent=0 // pred_check
    _
  $region23: #{digit_transformer.1} parent=0 // pred_check_branch
    %27 = sbr.rel (0) target = $region25
  $region24: #{digit_transformer.1} parent=0 // pred_region
    _
  $region25: #{digit_transformer.1} parent=0 // pred_fallthru
    _
  // Predicated region
  $region26: #{digit_transformer.1} parent=0 // pred_check
    _
  $region27: #{digit_transformer.1} parent=0 // pred_check_branch
    %29 = sbr.rel (0) target = $region29
  $region28: #{digit_transformer.1} parent=0 // pred_region
    _
  $region29: #{digit_transformer.1} parent=0 // pred_fallthru
    _
  // Predicated region
  $region30: #{digit_transformer.1} parent=0 // pred_check
    _
  $region31: #{digit_transformer.1} parent=0 // pred_check_branch
    %31 = sbr.rel (0) target = $region33
  $region32: #{digit_transformer.1} parent=0 // pred_region
    _
  $region33: #{digit_transformer.1} parent=0 // pred_fallthru
    _
  // Predicated region
  $region34: #{digit_transformer.1} parent=0 // pred_check
    _
  $region35: #{digit_transformer.1} parent=0 // pred_check_branch
    %33 = sbr.rel (0) target = $region37
  $region36: #{digit_transformer.1} parent=0 // pred_region
    _
  $region37: #{digit_transformer.1} parent=0 // pred_fallthru
    _
  // Predicated region
  $region38: #{digit_transformer.1} parent=0 // pred_check
    _
  $region39: #{digit_transformer.1} parent=0 // pred_check_branch
    %35 = sbr.rel (0) target = $region41
  $region40: #{digit_transformer.1} parent=0 // pred_region
    _
  $region41: #{digit_transformer.1} parent=0 // pred_fallthru
    _
  // Predicated region
  $region42: #{digit_transformer.1} parent=0 // pred_check
    _
  $region43: #{digit_transformer.1} parent=0 // pred_check_branch
    %37 = sbr.rel (0) target = $region45
  $region44: #{digit_transformer.1} parent=0 // pred_region
    _
  $region45: #{digit_transformer.1} parent=0 // pred_fallthru
    _
  %v39 = vld [vmem:[%s0] sm:$0xff]
  %v40 = vld [vmem:[%s0 + $0x8] sm:$0xff]
  %v41 = vld [vmem:[%s0 + $0x10] sm:$0xff]
  %v42 = vld [vmem:[%s0 + $0x18] sm:$0xf]
  %v46 = vcombine.high %v39, %v39
  %v47 = vcombine.high %v40, %v40
  %v48 = vcombine.high %v41, %v41
  %v52 = vpack.c.bf16 %v39, %v39
  %v53 = vpack.c.bf16 %v46, %v46
  %v54 = vpack.c.bf16 %v40, %v40
  %v55 = vpack.c.bf16 %v47, %v47
  %v56 = vpack.c.bf16 %v41, %v41
  %v57 = vpack.c.bf16 %v48, %v48
  %v58 = vpack.c.bf16 %v42, %v42
  %v59 = vld [vmem:[%s1] sm:$0xf]
  %v60 = vld [vmem:[%s1 + $0x4] sm:$0xf]
  %v61 = vld [vmem:[%s1 + $0x8] sm:$0xf]
  %v62 = vld [vmem:[%s1 + $0xc] sm:$0xf]
  %v63 = vld [vmem:[%s1 + $0x10] sm:$0xf]
  %v64 = vld [vmem:[%s1 + $0x14] sm:$0xf]
  %v65 = vld [vmem:[%s1 + $0x18] sm:$0xf]
  %v66 = vld [vmem:[%s1 + $0x1c] sm:$0xf]
  %v67 = vld [vmem:[%s1 + $0x20] sm:$0xf]
  %v68 = vld [vmem:[%s1 + $0x24] sm:$0xf]
  %v69 = vld [vmem:[%s1 + $0x28] sm:$0xf]
  %v70 = vld [vmem:[%s1 + $0x2c] sm:$0xf]
  %v71 = vld [vmem:[%s1 + $0x30] sm:$0xf]
  %v72 = vld [vmem:[%s1 + $0x34] sm:$0xf]
  %v73 = vld [vmem:[%s1 + $0x38] sm:$0xf]
  %v74 = vld [vmem:[%s1 + $0x3c] sm:$0xf]
  %v75 = vld [vmem:[%s1 + $0x40] sm:$0xf]
  %v76 = vld [vmem:[%s1 + $0x44] sm:$0xf]
  %v77 = vld [vmem:[%s1 + $0x48] sm:$0xf]
  %v78 = vld [vmem:[%s1 + $0x4c] sm:$0xf]
  %v79 = vld [vmem:[%s1 + $0x50] sm:$0xf]
  %v80 = vld [vmem:[%s1 + $0x54] sm:$0xf]
  %v81 = vld [vmem:[%s1 + $0x58] sm:$0xf]
  %v82 = vld [vmem:[%s1 + $0x5c] sm:$0xf]
  %v83 = vld [vmem:[%s1 + $0x60] sm:$0xf]
  %v84 = vld [vmem:[%s1 + $0x64] sm:$0xf]
  %v85 = vld [vmem:[%s1 + $0x68] sm:$0xf]
  %v86 = vld [vmem:[%s1 + $0x6c] sm:$0xf]
  %v87 = vld [vmem:[%s1 + $0x70] sm:$0xf]
  %v88 = vld [vmem:[%s1 + $0x74] sm:$0xf]
  %v89 = vld [vmem:[%s1 + $0x78] sm:$0xf]
  %v90 = vld [vmem:[%s1 + $0x7c] sm:$0xf]
  %v91 = vld [vmem:[%s1 + $0x80] sm:$0xf]
  %v92 = vld [vmem:[%s1 + $0x84] sm:$0xf]
  %v93 = vld [vmem:[%s1 + $0x88] sm:$0xf]
  %v94 = vld [vmem:[%s1 + $0x8c] sm:$0xf]
  %v95 = vld [vmem:[%s1 + $0x90] sm:$0xf]
  %v96 = vld [vmem:[%s1 + $0x94] sm:$0xf]
  %v97 = vld [vmem:[%s1 + $0x98] sm:$0xf]
  %v98 = vld [vmem:[%s1 + $0x9c] sm:$0xf]
  %v99 = vld [vmem:[%s1 + $0xa0] sm:$0xf]
  %v100 = vld [vmem:[%s1 + $0xa4] sm:$0xf]
  %v101 = vld [vmem:[%s1 + $0xa8] sm:$0xf]
  %v102 = vld [vmem:[%s1 + $0xac] sm:$0xf]
  %v103 = vld [vmem:[%s1 + $0xb0] sm:$0xf]
  %v104 = vld [vmem:[%s1 + $0xb4] sm:$0xf]
  %v105 = vld [vmem:[%s1 + $0xb8] sm:$0xf]
  %v106 = vld [vmem:[%s1 + $0xbc] sm:$0xf]
  %v107 = vld [vmem:[%s1 + $0xc0] sm:$0xf]
  %v108 = vld [vmem:[%s1 + $0xc4] sm:$0xf]
  %v109 = vld [vmem:[%s1 + $0xc8] sm:$0xf]
  %v110 = vld [vmem:[%s1 + $0xcc] sm:$0xf]
  %v111 = vld [vmem:[%s1 + $0xd0] sm:$0xf]
  %v112 = vld [vmem:[%s1 + $0xd4] sm:$0xf]
  %v113 = vld [vmem:[%s1 + $0xd8] sm:$0xf]
  %v114 = vld [vmem:[%s1 + $0xdc] sm:$0xf]
  %v115 = vld [vmem:[%s1 + $0xe0] sm:$0xf]
  %v116 = vld [vmem:[%s1 + $0xe4] sm:$0xf]
  %v117 = vld [vmem:[%s1 + $0xe8] sm:$0xf]
  %v118 = vld [vmem:[%s1 + $0xec] sm:$0xf]
  %v119 = vld [vmem:[%s1 + $0xf0] sm:$0xf]
  %v120 = vld [vmem:[%s1 + $0xf4] sm:$0xf]
  %v121 = vld [vmem:[%s1 + $0xf8] sm:$0xf]
  %v122 = vld [vmem:[%s1 + $0xfc] sm:$0xf]
  %v123 = vld [vmem:[%s1 + $0x100] sm:$0xf]
  %v124 = vld [vmem:[%s1 + $0x104] sm:$0xf]
  %v125 = vld [vmem:[%s1 + $0x108] sm:$0xf]
  %v126 = vld [vmem:[%s1 + $0x10c] sm:$0xf]
  %v127 = vld [vmem:[%s1 + $0x110] sm:$0xf]
  %v128 = vld [vmem:[%s1 + $0x114] sm:$0xf]
  %v129 = vld [vmem:[%s1 + $0x118] sm:$0xf]
  %v130 = vld [vmem:[%s1 + $0x11c] sm:$0xf]
  %v131 = vld [vmem:[%s1 + $0x120] sm:$0xf]
  %v132 = vld [vmem:[%s1 + $0x124] sm:$0xf]
  %v133 = vld [vmem:[%s1 + $0x128] sm:$0xf]
  %v134 = vld [vmem:[%s1 + $0x12c] sm:$0xf]
  %v135 = vld [vmem:[%s1 + $0x130] sm:$0xf]
  %v136 = vld [vmem:[%s1 + $0x134] sm:$0xf]
  %v137 = vld [vmem:[%s1 + $0x138] sm:$0xf]
  %v138 = vld [vmem:[%s1 + $0x13c] sm:$0xf]
  %v139 = vld [vmem:[%s1 + $0x140] sm:$0xf]
  %v140 = vld [vmem:[%s1 + $0x144] sm:$0xf]
  %v141 = vld [vmem:[%s1 + $0x148] sm:$0xf]
  %v142 = vld [vmem:[%s1 + $0x14c] sm:$0xf]
  %v143 = vld [vmem:[%s1 + $0x150] sm:$0xf]
  %v144 = vld [vmem:[%s1 + $0x154] sm:$0xf]
  %v145 = vld [vmem:[%s1 + $0x158] sm:$0xf]
  %v146 = vld [vmem:[%s1 + $0x15c] sm:$0xf]
  %v147 = vld [vmem:[%s1 + $0x160] sm:$0xf]
  %v148 = vld [vmem:[%s1 + $0x164] sm:$0xf]
  %v149 = vld [vmem:[%s1 + $0x168] sm:$0xf]
  %v150 = vld [vmem:[%s1 + $0x16c] sm:$0xf]
  %v151 = vld [vmem:[%s1 + $0x170] sm:$0xf]
  %v152 = vld [vmem:[%s1 + $0x174] sm:$0xf]
  %v153 = vld [vmem:[%s1 + $0x178] sm:$0xf]
  %v154 = vld [vmem:[%s1 + $0x17c] sm:$0xf]
  %v155 = vld [vmem:[%s1 + $0x180] sm:$0xf]
  %v156 = vld [vmem:[%s1 + $0x184] sm:$0xf]
  %v157 = vld [vmem:[%s2] sm:$0x1]
  %v159 = vlaneseq
  %v160 = vshrl.u32 %v159, 7
  %v161 = vsub.s32 0, %v160
  %v162 = vrot.slane %v157, %v161
  %v262 = vunpack.c.l.b16 %v59
  %v263 = vunpack.c.l.b16 %v60
  %v264 = vunpack.c.l.b16 %v61
  %v265 = vunpack.c.l.b16 %v62
  %v266 = vunpack.c.l.b16 %v63
  %v267 = vunpack.c.l.b16 %v64
  %v268 = vunpack.c.l.b16 %v65
  %v269 = vunpack.c.l.b16 %v66
  %v270 = vunpack.c.l.b16 %v67
  %v271 = vunpack.c.l.b16 %v68
  %v272 = vunpack.c.l.b16 %v69
  %v273 = vunpack.c.l.b16 %v70
  %v274 = vunpack.c.l.b16 %v71
  %v275 = vunpack.c.l.b16 %v72
  %v276 = vunpack.c.l.b16 %v73
  %v277 = vunpack.c.l.b16 %v74
  %v278 = vunpack.c.l.b16 %v75
  %v279 = vunpack.c.l.b16 %v76
  %v280 = vunpack.c.l.b16 %v77
  %v281 = vunpack.c.l.b16 %v78
  %v282 = vunpack.c.l.b16 %v79
  %v283 = vunpack.c.l.b16 %v80
  %v284 = vunpack.c.l.b16 %v81
  %v285 = vunpack.c.l.b16 %v82
  %v286 = vunpack.c.l.b16 %v83
  %v287 = vunpack.c.l.b16 %v84
  %v288 = vunpack.c.l.b16 %v85
  %v289 = vunpack.c.l.b16 %v86
  %v290 = vunpack.c.l.b16 %v87
  %v291 = vunpack.c.l.b16 %v88
  %v292 = vunpack.c.l.b16 %v89
  %v293 = vunpack.c.l.b16 %v90
  %v294 = vunpack.c.l.b16 %v91
  %v295 = vunpack.c.l.b16 %v92
  %v296 = vunpack.c.l.b16 %v93
  %v297 = vunpack.c.l.b16 %v94
  %v298 = vunpack.c.l.b16 %v95
  %v299 = vunpack.c.l.b16 %v96
  %v300 = vunpack.c.l.b16 %v97
  %v301 = vunpack.c.l.b16 %v98
  %v302 = vunpack.c.l.b16 %v99
  %v303 = vunpack.c.l.b16 %v100
  %v304 = vunpack.c.l.b16 %v101
  %v305 = vunpack.c.l.b16 %v102
  %v306 = vunpack.c.l.b16 %v103
  %v307 = vunpack.c.l.b16 %v104
  %v308 = vunpack.c.l.b16 %v105
  %v309 = vunpack.c.l.b16 %v106
  %v310 = vunpack.c.l.b16 %v107
  %v311 = vunpack.c.l.b16 %v108
  %v312 = vunpack.c.l.b16 %v109
  %v313 = vunpack.c.l.b16 %v110
  %v314 = vunpack.c.l.b16 %v111
  %v315 = vunpack.c.l.b16 %v112
  %v316 = vunpack.c.l.b16 %v113
  %v317 = vunpack.c.l.b16 %v114
  %v318 = vunpack.c.l.b16 %v115
  %v319 = vunpack.c.l.b16 %v116
  %v320 = vunpack.c.l.b16 %v117
  %v321 = vunpack.c.l.b16 %v118
  %v322 = vunpack.c.l.b16 %v119
  %v323 = vunpack.c.l.b16 %v120
  %v324 = vunpack.c.l.b16 %v121
  %v325 = vunpack.c.l.b16 %v122
  %v326 = vunpack.c.l.b16 %v123
  %v327 = vunpack.c.l.b16 %v124
  %v328 = vunpack.c.l.b16 %v125
  %v329 = vunpack.c.l.b16 %v126
  %v330 = vunpack.c.l.b16 %v127
  %v331 = vunpack.c.l.b16 %v128
  %v332 = vunpack.c.l.b16 %v129
  %v333 = vunpack.c.l.b16 %v130
  %v334 = vunpack.c.l.b16 %v131
  %v335 = vunpack.c.l.b16 %v132
  %v336 = vunpack.c.l.b16 %v133
  %v337 = vunpack.c.l.b16 %v134
  %v338 = vunpack.c.l.b16 %v135
  %v339 = vunpack.c.l.b16 %v136
  %v340 = vunpack.c.l.b16 %v137
  %v341 = vunpack.c.l.b16 %v138
  %v342 = vunpack.c.l.b16 %v139
  %v343 = vunpack.c.l.b16 %v140
  %v344 = vunpack.c.l.b16 %v141
  %v345 = vunpack.c.l.b16 %v142
  %v346 = vunpack.c.l.b16 %v143
  %v347 = vunpack.c.l.b16 %v144
  %v348 = vunpack.c.l.b16 %v145
  %v349 = vunpack.c.l.b16 %v146
  %v350 = vunpack.c.l.b16 %v147
  %v351 = vunpack.c.l.b16 %v148
  %v352 = vunpack.c.l.b16 %v149
  %v353 = vunpack.c.l.b16 %v150
  %v354 = vunpack.c.l.b16 %v151
  %v355 = vunpack.c.l.b16 %v152
  %v356 = vunpack.c.l.b16 %v153
  %v357 = vunpack.c.l.b16 %v154
  %v358 = vunpack.c.l.b16 %v155
  %v359 = vunpack.c.l.b16 %v156
  %v360 = vpack.c.b16 %v263, %v262
  %v361 = vpack.c.b16 %v265, %v264
  %v362 = vpack.c.b16 %v267, %v266
  %v363 = vpack.c.b16 %v269, %v268
  %v364 = vpack.c.b16 %v271, %v270
  %v365 = vpack.c.b16 %v273, %v272
  %v366 = vpack.c.b16 %v275, %v274
  %v367 = vpack.c.b16 %v277, %v276
  %v368 = vpack.c.b16 %v279, %v278
  %v369 = vpack.c.b16 %v281, %v280
  %v370 = vpack.c.b16 %v283, %v282
  %v371 = vpack.c.b16 %v285, %v284
  %v372 = vpack.c.b16 %v287, %v286
  %v373 = vpack.c.b16 %v289, %v288
  %v374 = vpack.c.b16 %v291, %v290
  %v375 = vpack.c.b16 %v293, %v292
  %v376 = vpack.c.b16 %v295, %v294
  %v377 = vpack.c.b16 %v297, %v296
  %v378 = vpack.c.b16 %v299, %v298
  %v379 = vpack.c.b16 %v301, %v300
  %v380 = vpack.c.b16 %v303, %v302
  %v381 = vpack.c.b16 %v305, %v304
  %v382 = vpack.c.b16 %v307, %v306
  %v383 = vpack.c.b16 %v309, %v308
  %v384 = vpack.c.b16 %v311, %v310
  %v385 = vpack.c.b16 %v313, %v312
  %v386 = vpack.c.b16 %v315, %v314
  %v387 = vpack.c.b16 %v317, %v316
  %v388 = vpack.c.b16 %v319, %v318
  %v389 = vpack.c.b16 %v321, %v320
  %v390 = vpack.c.b16 %v323, %v322
  %v391 = vpack.c.b16 %v325, %v324
  %v392 = vpack.c.b16 %v327, %v326
  %v393 = vpack.c.b16 %v329, %v328
  %v394 = vpack.c.b16 %v331, %v330
  %v395 = vpack.c.b16 %v333, %v332
  %v396 = vpack.c.b16 %v335, %v334
  %v397 = vpack.c.b16 %v337, %v336
  %v398 = vpack.c.b16 %v339, %v338
  %v399 = vpack.c.b16 %v341, %v340
  %v400 = vpack.c.b16 %v343, %v342
  %v401 = vpack.c.b16 %v345, %v344
  %v402 = vpack.c.b16 %v347, %v346
  %v403 = vpack.c.b16 %v349, %v348
  %v404 = vpack.c.b16 %v351, %v350
  %v405 = vpack.c.b16 %v353, %v352
  %v406 = vpack.c.b16 %v355, %v354
  %v407 = vpack.c.b16 %v357, %v356
  %v408 = vpack.c.b16 %v359, %v358
  %vm458 = vcmask 130048
  %v460 = vsel %vm458, %v58, 0
  %462 = vmatprep.subr.bf16.mxu0 0
  %463 = vmatpush1.bf16.msra.mxu0 %v360
  %464 = vmatprep.subr.bf16.mxu0 0
  %465 = vmatpush1.bf16.msra.mxu0 %v361
  %466 = vmatprep.subr.bf16.mxu0 0
  %467 = vmatpush1.bf16.msra.mxu0 %v362
  %468 = vmatprep.subr.bf16.mxu0 0
  %469 = vmatpush1.bf16.msra.mxu0 %v363
  %470 = vmatprep.subr.bf16.mxu0 0
  %471 = vmatpush1.bf16.msra.mxu0 %v364
  %472 = vmatprep.subr.bf16.mxu0 0
  %473 = vmatpush1.bf16.msra.mxu0 %v365
  %474 = vmatprep.subr.bf16.mxu0 0
  %475 = vmatpush1.bf16.msra.mxu0 %v366
  %476 = vmatprep.subr.bf16.mxu0 0
  %477 = vmatpush1.bf16.msra.mxu0 %v367
  %478 = vmatprep.subr.bf16.mxu0 0
  %479 = vmatpush1.bf16.msra.mxu0 %v368
  %480 = vmatprep.subr.bf16.mxu0 0
  %481 = vmatpush1.bf16.msra.mxu0 %v369
  %482 = vmatprep.subr.bf16.mxu0 0
  %483 = vmatpush1.bf16.msra.mxu0 %v370
  %484 = vmatprep.subr.bf16.mxu0 0
  %485 = vmatpush1.bf16.msra.mxu0 %v371
  %486 = vmatprep.subr.bf16.mxu0 0
  %487 = vmatpush1.bf16.msra.mxu0 %v372
  %488 = vmatprep.subr.bf16.mxu0 0
  %489 = vmatpush1.bf16.msra.mxu0 %v373
  %490 = vmatprep.subr.bf16.mxu0 0
  %491 = vmatpush1.bf16.msra.mxu0 %v374
  %492 = vmatprep.subr.bf16.mxu0 0
  %493 = vmatpush1.bf16.msra.mxu0 %v375
  %494 = vmatprep.mubr.bf16.mxu0 %v53
  %495 = vmatmul.mubr.bf16.gmra.mrb[0].mxu0 %v52
  %v496 = vpop.f32.mrb[0].mxu0
  %v497 = vadd.f32 %v162, %v496
  %v498 = vpop.f32.mrb[0].mxu0
  %v499 = vpop.f32.mrb[0].mxu0
  %v500 = vpop.f32.mrb[0].mxu0
  %501 = vdwg.mxu0
  %502 = vmatprep.subr.bf16.mxu0 0
  %503 = vmatpush1.bf16.msra.mxu0 %v376
  %504 = vmatprep.subr.bf16.mxu0 0
  %505 = vmatpush1.bf16.msra.mxu0 %v377
  %506 = vmatprep.subr.bf16.mxu0 0
  %507 = vmatpush1.bf16.msra.mxu0 %v378
  %508 = vmatprep.subr.bf16.mxu0 0
  %509 = vmatpush1.bf16.msra.mxu0 %v379
  %510 = vmatprep.subr.bf16.mxu0 0
  %511 = vmatpush1.bf16.msra.mxu0 %v380
  %512 = vmatprep.subr.bf16.mxu0 0
  %513 = vmatpush1.bf16.msra.mxu0 %v381
  %514 = vmatprep.subr.bf16.mxu0 0
  %515 = vmatpush1.bf16.msra.mxu0 %v382
  %516 = vmatprep.subr.bf16.mxu0 0
  %517 = vmatpush1.bf16.msra.mxu0 %v383
  %518 = vmatprep.subr.bf16.mxu0 0
  %519 = vmatpush1.bf16.msra.mxu0 %v384
  %520 = vmatprep.subr.bf16.mxu0 0
  %521 = vmatpush1.bf16.msra.mxu0 %v385
  %522 = vmatprep.subr.bf16.mxu0 0
  %523 = vmatpush1.bf16.msra.mxu0 %v386
  %524 = vmatprep.subr.bf16.mxu0 0
  %525 = vmatpush1.bf16.msra.mxu0 %v387
  %526 = vmatprep.subr.bf16.mxu0 0
  %527 = vmatpush1.bf16.msra.mxu0 %v388
  %528 = vmatprep.subr.bf16.mxu0 0
  %529 = vmatpush1.bf16.msra.mxu0 %v389
  %530 = vmatprep.subr.bf16.mxu0 0
  %531 = vmatpush1.bf16.msra.mxu0 %v390
  %532 = vmatprep.subr.bf16.mxu0 0
  %533 = vmatpush1.bf16.msra.mxu0 %v391
  %534 = vmatprep.mubr.bf16.mxu0 %v55
  %535 = vmatmul.mubr.bf16.gmra.mrb[0].mxu0 %v54
  %v536 = vpop.f32.mrb[0].mxu0
  %v537 = vadd.f32 %v497, %v536
  %v538 = vpop.f32.mrb[0].mxu0
  %v539 = vpop.f32.mrb[0].mxu0
  %v540 = vpop.f32.mrb[0].mxu0
  %541 = vdwg.mxu0
  %542 = vmatprep.subr.bf16.mxu0 0
  %543 = vmatpush1.bf16.msra.mxu0 %v392
  %544 = vmatprep.subr.bf16.mxu0 0
  %545 = vmatpush1.bf16.msra.mxu0 %v393
  %546 = vmatprep.subr.bf16.mxu0 0
  %547 = vmatpush1.bf16.msra.mxu0 %v394
  %548 = vmatprep.subr.bf16.mxu0 0
  %549 = vmatpush1.bf16.msra.mxu0 %v395
  %550 = vmatprep.subr.bf16.mxu0 0
  %551 = vmatpush1.bf16.msra.mxu0 %v396
  %552 = vmatprep.subr.bf16.mxu0 0
  %553 = vmatpush1.bf16.msra.mxu0 %v397
  %554 = vmatprep.subr.bf16.mxu0 0
  %555 = vmatpush1.bf16.msra.mxu0 %v398
  %556 = vmatprep.subr.bf16.mxu0 0
  %557 = vmatpush1.bf16.msra.mxu0 %v399
  %558 = vmatprep.subr.bf16.mxu0 0
  %559 = vmatpush1.bf16.msra.mxu0 %v400
  %560 = vmatprep.subr.bf16.mxu0 0
  %561 = vmatpush1.bf16.msra.mxu0 %v401
  %562 = vmatprep.subr.bf16.mxu0 0
  %563 = vmatpush1.bf16.msra.mxu0 %v402
  %564 = vmatprep.subr.bf16.mxu0 0
  %565 = vmatpush1.bf16.msra.mxu0 %v403
  %566 = vmatprep.subr.bf16.mxu0 0
  %567 = vmatpush1.bf16.msra.mxu0 %v404
  %568 = vmatprep.subr.bf16.mxu0 0
  %569 = vmatpush1.bf16.msra.mxu0 %v405
  %570 = vmatprep.subr.bf16.mxu0 0
  %571 = vmatpush1.bf16.msra.mxu0 %v406
  %572 = vmatprep.subr.bf16.mxu0 0
  %573 = vmatpush1.bf16.msra.mxu0 %v407
  %574 = vmatprep.mubr.bf16.mxu0 %v57
  %575 = vmatmul.mubr.bf16.gmra.mrb[0].mxu0 %v56
  %v576 = vpop.f32.mrb[0].mxu0
  %v577 = vadd.f32 %v537, %v576
  %v578 = vpop.f32.mrb[0].mxu0
  %v579 = vpop.f32.mrb[0].mxu0
  %v580 = vpop.f32.mrb[0].mxu0
  %581 = vdwg.mxu0
  %582 = vmatprep.subr.bf16.mxu0 0
  %583 = vmatpush1.bf16.msra.mxu0 %v408
  %584 = vmatprep.subr.bf16.mxu0 0
  %585 = vmatpush1.bf16.msra.mxu0 0
  %586 = vmatprep.subr.bf16.mxu0 0
  %587 = vmatpush1.bf16.msra.mxu0 0
  %588 = vmatprep.subr.bf16.mxu0 0
  %589 = vmatpush1.bf16.msra.mxu0 0
  %590 = vmatprep.subr.bf16.mxu0 0
  %591 = vmatpush1.bf16.msra.mxu0 0
  %592 = vmatprep.subr.bf16.mxu0 0
  %593 = vmatpush1.bf16.msra.mxu0 0
  %594 = vmatprep.subr.bf16.mxu0 0
  %595 = vmatpush1.bf16.msra.mxu0 0
  %596 = vmatprep.subr.bf16.mxu0 0
  %597 = vmatpush1.bf16.msra.mxu0 0
  %598 = vmatprep.subr.bf16.mxu0 0
  %599 = vmatpush1.bf16.msra.mxu0 0
  %600 = vmatprep.subr.bf16.mxu0 0
  %601 = vmatpush1.bf16.msra.mxu0 0
  %602 = vmatprep.subr.bf16.mxu0 0
  %603 = vmatpush1.bf16.msra.mxu0 0
  %604 = vmatprep.subr.bf16.mxu0 0
  %605 = vmatpush1.bf16.msra.mxu0 0
  %606 = vmatprep.subr.bf16.mxu0 0
  %607 = vmatpush1.bf16.msra.mxu0 0
  %608 = vmatprep.subr.bf16.mxu0 0
  %609 = vmatpush1.bf16.msra.mxu0 0
  %610 = vmatprep.subr.bf16.mxu0 0
  %611 = vmatpush1.bf16.msra.mxu0 0
  %612 = vmatprep.subr.bf16.mxu0 0
  %613 = vmatpush1.bf16.msra.mxu0 0
  %614 = vmatprep.mubr.bf16.mxu0 0
  %615 = vmatmul.mubr.bf16.gmra.mrb[0].mxu0 %v460
  %v616 = vpop.f32.mrb[0].mxu0
  %v617 = vadd.f32 %v577, %v616
  %v618 = vpop.f32.mrb[0].mxu0
  %v619 = vpop.f32.mrb[0].mxu0
  %v620 = vpop.f32.mrb[0].mxu0
  %621 = vdwg.mxu0
  %vm622 = vcmask 519168
  %v623 = vsel %vm622, %v617, 0.0
  %624 = vadd.xlane.f32.xlu0 %v623
  %v625 = vpop.xlane.xlu0 %624
  %v626 = vrcp.pop 64.0
  %v627 = vmul.f32 %v625, %v626
  %v628 = vsub.f32 %v617, %v627
  %v629 = vmul.f32 %v628, %v628
  %v630 = vsel %vm622, %v629, 0.0
  %631 = vadd.xlane.f32.xlu0 %v630
  %v632 = vpop.xlane.xlu0 %631
  %v633 = vmul.f32 %v632, %v626
  %v634 = vadd.f32 %v633, 1e-05
  %v635 = vrsqrt.pop %v634
  %v636 = vmul.f32 %v628, %v635
  %v637 = vld [vmem:[%s3] sm:$0x1]
  %v639 = vlaneseq
  %v640 = vshrl.u32 %v639, 7
  %v641 = vsub.s32 0, %v640
  %v642 = vrot.slane %v637, %v641
  %v644 = vmul.f32 %v636, %v642
  %v645 = vld [vmem:[%s4] sm:$0x1]
  %v647 = vlaneseq
  %v648 = vshrl.u32 %v647, 7
  %v649 = vsub.s32 0, %v648
  %v650 = vrot.slane %v645, %v649
  %v652 = vadd.f32 %v644, %v650
  %v653 = vpack.c.bf16 %v652, %v652
  %v654 = vld [vmem:[%s5] sm:$0xff]
  %v655 = vld [vmem:[%s5 + $0x8] sm:$0xff]
  %v656 = vld [vmem:[%s5 + $0x10] sm:$0xff]
  %v657 = vld [vmem:[%s5 + $0x18] sm:$0xff]
  %v658 = vld [vmem:[%s5 + $0x20] sm:$0xff]
  %v659 = vld [vmem:[%s5 + $0x28] sm:$0xff]
  %v660 = vld [vmem:[%s5 + $0x30] sm:$0xff]
  %v661 = vld [vmem:[%s5 + $0x38] sm:$0xff]
  %v662 = vld [vmem:[%s6] sm:$0x3]
  %v664 = vlaneseq
  %v665 = vshrl.u32 %v664, 7
  %v666 = vsub.s32 0, %v665
  %v667 = vrot.slane %v662, %v666
  %v668 = vlaneseq
  %v669 = vshrl.u32 %v668, 7
  %v670 = vsub.s32 1, %v669
  %v671 = vrot.slane %v662, %v670
  %v682 = vunpack.c.l.b16 %v654
  %v683 = vunpack.c.h.b16 %v654
  %v684 = vunpack.c.l.b16 %v655
  %v685 = vunpack.c.h.b16 %v655
  %v686 = vunpack.c.l.b16 %v656
  %v687 = vunpack.c.h.b16 %v656
  %v688 = vunpack.c.l.b16 %v657
  %v689 = vunpack.c.h.b16 %v657
  %v690 = vunpack.c.l.b16 %v658
  %v691 = vunpack.c.h.b16 %v658
  %v692 = vunpack.c.l.b16 %v659
  %v693 = vunpack.c.h.b16 %v659
  %v694 = vunpack.c.l.b16 %v660
  %v695 = vunpack.c.h.b16 %v660
  %v696 = vunpack.c.l.b16 %v661
  %v697 = vunpack.c.h.b16 %v661
  %v698 = vpack.c.b16 %v684, %v682
  %v699 = vpack.c.b16 %v685, %v683
  %v700 = vpack.c.b16 %v688, %v686
  %v701 = vpack.c.b16 %v689, %v687
  %v702 = vpack.c.b16 %v692, %v690
  %v703 = vpack.c.b16 %v693, %v691
  %v704 = vpack.c.b16 %v696, %v694
  %v705 = vpack.c.b16 %v697, %v695
  %vm714 = vcmask 523264
  %v716 = vsel %vm714, %v653, 0
  %718 = vmatprep.subr.bf16.mxu0 %v699
  %719 = vmatpush1.bf16.msra.mxu0 %v698
  %720 = vmatprep.subr.bf16.mxu0 %v701
  %721 = vmatpush1.bf16.msra.mxu0 %v700
  %722 = vmatprep.subr.bf16.mxu0 %v703
  %723 = vmatpush1.bf16.msra.mxu0 %v702
  %724 = vmatprep.subr.bf16.mxu0 %v705
  %725 = vmatpush1.bf16.msra.mxu0 %v704
  %726 = vmatprep.subr.bf16.mxu0 0
  %727 = vmatpush1.bf16.msra.mxu0 0
  %728 = vmatprep.subr.bf16.mxu0 0
  %729 = vmatpush1.bf16.msra.mxu0 0
  %730 = vmatprep.subr.bf16.mxu0 0
  %731 = vmatpush1.bf16.msra.mxu0 0
  %732 = vmatprep.subr.bf16.mxu0 0
  %733 = vmatpush1.bf16.msra.mxu0 0
  %734 = vmatprep.subr.bf16.mxu0 0
  %735 = vmatpush1.bf16.msra.mxu0 0
  %736 = vmatprep.subr.bf16.mxu0 0
  %737 = vmatpush1.bf16.msra.mxu0 0
  %738 = vmatprep.subr.bf16.mxu0 0
  %739 = vmatpush1.bf16.msra.mxu0 0
  %740 = vmatprep.subr.bf16.mxu0 0
  %741 = vmatpush1.bf16.msra.mxu0 0
  %742 = vmatprep.subr.bf16.mxu0 0
  %743 = vmatpush1.bf16.msra.mxu0 0
  %744 = vmatprep.subr.bf16.mxu0 0
  %745 = vmatpush1.bf16.msra.mxu0 0
  %746 = vmatprep.subr.bf16.mxu0 0
  %747 = vmatpush1.bf16.msra.mxu0 0
  %748 = vmatprep.subr.bf16.mxu0 0
  %749 = vmatpush1.bf16.msra.mxu0 0
  %750 = vmatprep.mubr.bf16.mxu0 0
  %751 = vmatmul.mubr.bf16.gmra.mrb[0].mxu0 %v716
  %v752 = vpop.f32.mrb[0].mxu0
  %v753 = vadd.f32 %v667, %v752
  %v754 = vpop.f32.mrb[0].mxu0
  %v755 = vadd.f32 %v671, %v754
  %v756 = vpop.f32.mrb[0].mxu0
  %v757 = vpop.f32.mrb[0].mxu0
  %758 = vdwg.mxu0
  %v759 = vmax.f32 %v753, 0.0
  %v760 = vmax.f32 %v755, 0.0
  %v761 = vpack.c.bf16 %v759, %v759
  %v762 = vpack.c.bf16 %v760, %v760
  %v763 = vld [vmem:[%s7] sm:$0xf]
  %v764 = vld [vmem:[%s7 + $0x4] sm:$0xf]
  %v765 = vld [vmem:[%s7 + $0x8] sm:$0xf]
  %v766 = vld [vmem:[%s7 + $0xc] sm:$0xf]
  %v767 = vld [vmem:[%s7 + $0x10] sm:$0xf]
  %v768 = vld [vmem:[%s7 + $0x14] sm:$0xf]
  %v769 = vld [vmem:[%s7 + $0x18] sm:$0xf]
  %v770 = vld [vmem:[%s7 + $0x1c] sm:$0xf]
  %v771 = vld [vmem:[%s7 + $0x20] sm:$0xf]
  %v772 = vld [vmem:[%s7 + $0x24] sm:$0xf]
  %v773 = vld [vmem:[%s7 + $0x28] sm:$0xf]
  %v774 = vld [vmem:[%s7 + $0x2c] sm:$0xf]
  %v775 = vld [vmem:[%s7 + $0x30] sm:$0xf]
  %v776 = vld [vmem:[%s7 + $0x34] sm:$0xf]
  %v777 = vld [vmem:[%s7 + $0x38] sm:$0xf]
  %v778 = vld [vmem:[%s7 + $0x3c] sm:$0xf]
  %v779 = vld [vmem:[%s7 + $0x40] sm:$0xf]
  %v780 = vld [vmem:[%s7 + $0x44] sm:$0xf]
  %v781 = vld [vmem:[%s7 + $0x48] sm:$0xf]
  %v782 = vld [vmem:[%s7 + $0x4c] sm:$0xf]
  %v783 = vld [vmem:[%s7 + $0x50] sm:$0xf]
  %v784 = vld [vmem:[%s7 + $0x54] sm:$0xf]
  %v785 = vld [vmem:[%s7 + $0x58] sm:$0xf]
  %v786 = vld [vmem:[%s7 + $0x5c] sm:$0xf]
  %v787 = vld [vmem:[%s7 + $0x60] sm:$0xf]
  %v788 = vld [vmem:[%s7 + $0x64] sm:$0xf]
  %v789 = vld [vmem:[%s7 + $0x68] sm:$0xf]
  %v790 = vld [vmem:[%s7 + $0x6c] sm:$0xf]
  %v791 = vld [vmem:[%s7 + $0x70] sm:$0xf]
  %v792 = vld [vmem:[%s7 + $0x74] sm:$0xf]
  %v793 = vld [vmem:[%s7 + $0x78] sm:$0xf]
  %v794 = vld [vmem:[%s7 + $0x7c] sm:$0xf]
  %v795 = vld [vmem:[%s8] sm:$0x1]
  %v797 = vlaneseq
  %v798 = vshrl.u32 %v797, 7
  %v799 = vsub.s32 0, %v798
  %v800 = vrot.slane %v795, %v799
  %v834 = vunpack.c.l.b16 %v763
  %v835 = vunpack.c.l.b16 %v764
  %v836 = vunpack.c.l.b16 %v765
  %v837 = vunpack.c.l.b16 %v766
  %v838 = vunpack.c.l.b16 %v767
  %v839 = vunpack.c.l.b16 %v768
  %v840 = vunpack.c.l.b16 %v769
  %v841 = vunpack.c.l.b16 %v770
  %v842 = vunpack.c.l.b16 %v771
  %v843 = vunpack.c.l.b16 %v772
  %v844 = vunpack.c.l.b16 %v773
  %v845 = vunpack.c.l.b16 %v774
  %v846 = vunpack.c.l.b16 %v775
  %v847 = vunpack.c.l.b16 %v776
  %v848 = vunpack.c.l.b16 %v777
  %v849 = vunpack.c.l.b16 %v778
  %v850 = vunpack.c.l.b16 %v779
  %v851 = vunpack.c.l.b16 %v780
  %v852 = vunpack.c.l.b16 %v781
  %v853 = vunpack.c.l.b16 %v782
  %v854 = vunpack.c.l.b16 %v783
  %v855 = vunpack.c.l.b16 %v784
  %v856 = vunpack.c.l.b16 %v785
  %v857 = vunpack.c.l.b16 %v786
  %v858 = vunpack.c.l.b16 %v787
  %v859 = vunpack.c.l.b16 %v788
  %v860 = vunpack.c.l.b16 %v789
  %v861 = vunpack.c.l.b16 %v790
  %v862 = vunpack.c.l.b16 %v791
  %v863 = vunpack.c.l.b16 %v792
  %v864 = vunpack.c.l.b16 %v793
  %v865 = vunpack.c.l.b16 %v794
  %v866 = vpack.c.b16 %v835, %v834
  %v867 = vpack.c.b16 %v837, %v836
  %v868 = vpack.c.b16 %v839, %v838
  %v869 = vpack.c.b16 %v841, %v840
  %v870 = vpack.c.b16 %v843, %v842
  %v871 = vpack.c.b16 %v845, %v844
  %v872 = vpack.c.b16 %v847, %v846
  %v873 = vpack.c.b16 %v849, %v848
  %v874 = vpack.c.b16 %v851, %v850
  %v875 = vpack.c.b16 %v853, %v852
  %v876 = vpack.c.b16 %v855, %v854
  %v877 = vpack.c.b16 %v857, %v856
  %v878 = vpack.c.b16 %v859, %v858
  %v879 = vpack.c.b16 %v861, %v860
  %v880 = vpack.c.b16 %v863, %v862
  %v881 = vpack.c.b16 %v865, %v864
  %898 = vmatprep.subr.bf16.mxu0 0
  %899 = vmatpush1.bf16.msra.mxu0 %v866
  %900 = vmatprep.subr.bf16.mxu0 0
  %901 = vmatpush1.bf16.msra.mxu0 %v867
  %902 = vmatprep.subr.bf16.mxu0 0
  %903 = vmatpush1.bf16.msra.mxu0 %v868
  %904 = vmatprep.subr.bf16.mxu0 0
  %905 = vmatpush1.bf16.msra.mxu0 %v869
  %906 = vmatprep.subr.bf16.mxu0 0
  %907 = vmatpush1.bf16.msra.mxu0 %v870
  %908 = vmatprep.subr.bf16.mxu0 0
  %909 = vmatpush1.bf16.msra.mxu0 %v871
  %910 = vmatprep.subr.bf16.mxu0 0
  %911 = vmatpush1.bf16.msra.mxu0 %v872
  %912 = vmatprep.subr.bf16.mxu0 0
  %913 = vmatpush1.bf16.msra.mxu0 %v873
  %914 = vmatprep.subr.bf16.mxu0 0
  %915 = vmatpush1.bf16.msra.mxu0 %v874
  %916 = vmatprep.subr.bf16.mxu0 0
  %917 = vmatpush1.bf16.msra.mxu0 %v875
  %918 = vmatprep.subr.bf16.mxu0 0
  %919 = vmatpush1.bf16.msra.mxu0 %v876
  %920 = vmatprep.subr.bf16.mxu0 0
  %921 = vmatpush1.bf16.msra.mxu0 %v877
  %922 = vmatprep.subr.bf16.mxu0 0
  %923 = vmatpush1.bf16.msra.mxu0 %v878
  %924 = vmatprep.subr.bf16.mxu0 0
  %925 = vmatpush1.bf16.msra.mxu0 %v879
  %926 = vmatprep.subr.bf16.mxu0 0
  %927 = vmatpush1.bf16.msra.mxu0 %v880
  %928 = vmatprep.subr.bf16.mxu0 0
  %929 = vmatpush1.bf16.msra.mxu0 %v881
  %930 = vmatprep.mubr.bf16.mxu0 %v762
  %931 = vmatmul.mubr.bf16.gmra.mrb[0].mxu0 %v761
  %v932 = vpop.f32.mrb[0].mxu0
  %v933 = vadd.f32 %v800, %v932
  %v934 = vpop.f32.mrb[0].mxu0
  %v935 = vpop.f32.mrb[0].mxu0
  %v936 = vpop.f32.mrb[0].mxu0
  %937 = vdwg.mxu0
  %v938 = vadd.f32 %v652, %v933
  %v939 = vsel %vm622, %v938, 0.0
  %940 = vadd.xlane.f32.xlu0 %v939
  %v941 = vpop.xlane.xlu0 %940
  %v942 = vmul.f32 %v941, %v626
  %v943 = vsub.f32 %v938, %v942
  %v944 = vmul.f32 %v943, %v943
  %v945 = vsel %vm622, %v944, 0.0
  %946 = vadd.xlane.f32.xlu0 %v945
  %v947 = vpop.xlane.xlu0 %946
  %v948 = vmul.f32 %v947, %v626
  %v949 = vadd.f32 %v948, 1e-05
  %v950 = vrsqrt.pop %v949
  %v951 = vmul.f32 %v943, %v950
  %v952 = vld [vmem:[%s9] sm:$0xf]
  %v953 = vpack.c.bf16 %v951, %v951
  %v954 = vld [vmem:[%s10] sm:$0xff]
  %956 = vset.pattern.permute.xlu0 0
  %957 = vperm.xlu0 %956, %v954
  %v958 = vpop.permute.xlu0 %957
  %v961 = vsel %vm714, %v952, 0
  %v964 = vsel %vm714, %v953, 0
  %966 = vmatprep.subr.bf16.mxu0 0
  %967 = vmatpush1.bf16.xpose.msra.mxu0 %v964
  %968 = vmatprep.subr.bf16.mxu0 0
  %969 = vmatpush1.bf16.xpose.msra.mxu0 0
  %970 = vmatprep.subr.bf16.mxu0 0
  %971 = vmatpush1.bf16.xpose.msra.mxu0 0
  %972 = vmatprep.subr.bf16.mxu0 0
  %973 = vmatpush1.bf16.xpose.msra.mxu0 0
  %974 = vmatprep.subr.bf16.mxu0 0
  %975 = vmatpush1.bf16.xpose.msra.mxu0 0
  %976 = vmatprep.subr.bf16.mxu0 0
  %977 = vmatpush1.bf16.xpose.msra.mxu0 0
  %978 = vmatprep.subr.bf16.mxu0 0
  %979 = vmatpush1.bf16.xpose.msra.mxu0 0
  %980 = vmatprep.subr.bf16.mxu0 0
  %981 = vmatpush1.bf16.xpose.msra.mxu0 0
  %982 = vmatprep.subr.bf16.mxu0 0
  %983 = vmatpush1.bf16.xpose.msra.mxu0 0
  %984 = vmatprep.subr.bf16.mxu0 0
  %985 = vmatpush1.bf16.xpose.msra.mxu0 0
  %986 = vmatprep.subr.bf16.mxu0 0
  %987 = vmatpush1.bf16.xpose.msra.mxu0 0
  %988 = vmatprep.subr.bf16.mxu0 0
  %989 = vmatpush1.bf16.xpose.msra.mxu0 0
  %990 = vmatprep.subr.bf16.mxu0 0
  %991 = vmatpush1.bf16.xpose.msra.mxu0 0
  %992 = vmatprep.subr.bf16.mxu0 0
  %993 = vmatpush1.bf16.xpose.msra.mxu0 0
  %994 = vmatprep.subr.bf16.mxu0 0
  %995 = vmatpush1.bf16.xpose.msra.mxu0 0
  %996 = vmatprep.subr.bf16.mxu0 0
  %997 = vmatpush1.bf16.xpose.msra.mxu0 0
  %998 = vmatprep.mubr.bf16.mxu0 0
  %999 = vmatmul.mubr.bf16.gmra.mrb[0].mxu0 %v961
  %v1000 = vpop.f32.mrb[0].mxu0
  %v1001 = vadd.f32 %v958, %v1000
  %v1002 = vpop.f32.mrb[0].mxu0
  %v1003 = vpop.f32.mrb[0].mxu0
  %v1004 = vpop.f32.mrb[0].mxu0
  %1005 = vdwg.mxu0
  %vm1006 = vcmask 31744
  %1007 = vst.msk [vmem:[%s11] sm:$0xff] %vm1006, %v1001
  // Predicated region
  $region46: #{digit_transformer.1} parent=0 // pred_check
    _
  $region47: #{digit_transformer.1} parent=0 // pred_check_branch
    %1009 = sbr.rel (0) target = $region49
  $region48: #{digit_transformer.1} parent=0 // pred_region
    _
  $region49: #{digit_transformer.1} parent=0 // pred_fallthru
    _
  // Predicated region
  $region50: #{digit_transformer.1} parent=0 // pred_check
    _
  $region51: #{digit_transformer.1} parent=0 // pred_check_branch
    %1011 = sbr.rel (0) target = $region53
  $region52: #{digit_transformer.1} parent=0 // pred_region
    _
  $region53: #{digit_transformer.1} parent=0 // pred_fallthru
    _

</llo_original>
